<compile_context>
chip_gen: v5e
topology: v5e:2x2
jax: 0.10.0
libtpu: 0.0.40
codegen_flags: <defaults>
</compile_context>

<pallas_src>
import jax
import jax.numpy as jnp
from jax.experimental import pallas as pl
from jax.experimental.pallas import tpu as pltpu

ANNUAL_GUIDELINE_IN_6MO_INTERVALS = 2.0
BIANNUAL_GUIDELINE_IN_6MO_INTERVALS = 4.0
AGE_THRESHOLD = 55.0

_LANE = 128
_SUBLANE = 16                       # multiple of both f32 (8) and bf16 (16) sublane tiling
_TILE_BYTES = 4 * 1024 * 1024       # per output block; x2 double-buffered stays < v5e 16 MiB
_MIN_ELEMENTS_FOR_PALLAS = 16384    # below this, fused XLA beats any kernel launch


def _round_up(x, m):
    return ((x + m - 1) // m) * m


def _round_down(x, m):
    return (x // m) * m


# ----------------------------------------------------------------------------
# Kernels
# ----------------------------------------------------------------------------
def _bcast_kernel(age_ref, out_ref):
    # age_ref: (TB, 1) f32 ; out_ref: (TB, TN) lane-dense tile of the (B, T) output.
    val = jnp.where(age_ref[...] >= AGE_THRESHOLD,
                    BIANNUAL_GUIDELINE_IN_6MO_INTERVALS,
                    ANNUAL_GUIDELINE_IN_6MO_INTERVALS)            # (TB, 1) f32
    out_ref[...] = jnp.broadcast_to(val, out_ref.shape).astype(out_ref.dtype)


def _flat_kernel(age_ref, expand_ref, out_ref):
    # age_ref:    (TB, G)   f32   -- G = 128 // T_pad patients per flat row
    # expand_ref: (G, 128)  bf16  -- expand[g, l] = 1 iff l // T_pad == g (constant input)
    # out_ref:    (TB, 128)       -- lane-dense flat view of the padded (B_pad, T_pad) output
    g = age_ref.shape[1]
    val = jnp.where(age_ref[...] >= AGE_THRESHOLD,
                    BIANNUAL_GUIDELINE_IN_6MO_INTERVALS,
                    ANNUAL_GUIDELINE_IN_6MO_INTERVALS).astype(jnp.bfloat16)   # (TB, G)
    if g == 1:
        out = jnp.broadcast_to(val, out_ref.shape)
    else:
        # Exact bf16 x bf16 routing matmul on the otherwise-idle MXU.
        out = jnp.dot(val, expand_ref[...], preferred_element_type=jnp.float32)
    out_ref[...] = out.astype(out_ref.dtype)


# ----------------------------------------------------------------------------
# Pallas wrappers
# ----------------------------------------------------------------------------
def _pallas_bcast(age_f32, B, T, out_dtype):
    """Lane-dense broadcast kernel. Preferred for T % 128 == 0; also the fallback for
    large awkward T (full-width blocks, >= 50% lane efficiency)."""
    age2d = age_f32.reshape(B, 1)
    itemsize = jnp.dtype(out_dtype).itemsize

    if T % _LANE == 0:
        TN = min(T, 2048)                       # multiple of 128 -> unmasked stores
    else:
        TN = T                                  # full-dim block (only used when T > 128)

    rows_budget = max(_SUBLANE, _TILE_BYTES // (TN * itemsize))
    if rows_budget >= B:
        TB = B                                  # full dim -> always a legal block
    else:
        TB = max(_SUBLANE, _round_down(rows_budget, _SUBLANE))

    # Guarantee >= 2 grid steps when possible so both v7x TensorCores participate.
    if pl.cdiv(B, TB) * pl.cdiv(T, TN) == 1 and B >= 2 * _SUBLANE:
        TB = _round_up(pl.cdiv(B, 2), _SUBLANE)

    grid = (pl.cdiv(B, TB), pl.cdiv(T, TN))
    return pl.pallas_call(
        _bcast_kernel,
        out_shape=jax.ShapeDtypeStruct((B, T), out_dtype),
        grid_spec=pltpu.PrefetchScalarGridSpec(
            num_scalar_prefetch=0,
            grid=grid,
            # NOTE: keep the T axis innermost and the age index_map returning (i, 0):
            # the age block index is constant across the inner loop so Pallas skips
            # re-DMA of the (TB, 1) age tile.  Do not "clean this up".
            in_specs=[pl.BlockSpec((TB, 1), lambda i, j: (i, 0))],
            out_specs=pl.BlockSpec((TB, TN), lambda i, j: (i, j)),
        ),
        compiler_params=pltpu.CompilerParams(
            dimension_semantics=("parallel", "parallel")),
    )(age2d)


def _pallas_flat(age_f32, B, T, out_dtype):
    """Generalized lane-dense 'flat slab' path for small horizons (T <= 128).

    Pads T up to T_pad = next power of two (a divisor of 128) and B up to a multiple of
    G = 128 // T_pad, writes a fully lane-dense (Rf, 128) slab with unmasked vst, then
    reshapes back to (B, T).  The reshape is free when no padding was needed; otherwise a
    single XLA slice pays for it (still far cheaper than T/128-masked stores).
    """
    T_pad = max(1, pl.next_power_of_2(T))       # divisor of 128 since T <= 128
    G = _LANE // T_pad
    B_pad = _round_up(B, G)
    Rf = (B_pad * T_pad) // _LANE

    age_pad = age_f32 if B_pad == B else jnp.pad(age_f32, (0, B_pad - B))
    age2d = age_pad.reshape(Rf, G)              # row r holds patients r*G .. r*G + G - 1

    # Constant lane-expansion matrix E[g, l] = 1 iff l // T_pad == g, built once in the
    # wrapper (hoisted out of the kernel) and DMA'd once via a constant index_map.
    lane_idx = jnp.arange(_LANE)[None, :]
    grp_idx = jnp.arange(G)[:, None]
    expand = (lane_idx // T_pad == grp_idx).astype(jnp.bfloat16)   # (G, 128)

    itemsize = jnp.dtype(out_dtype).itemsize
    rows_budget = max(_SUBLANE, _TILE_BYTES // (_LANE * itemsize))  # 8192 f32 / 16384 bf16
    if rows_budget >= Rf:
        TB = Rf                                  # full dim -> always a legal block
    else:
        TB = _round_down(rows_budget, _SUBLANE)

    # Guarantee >= 2 grid steps when possible so both v7x TensorCores participate.
    if pl.cdiv(Rf, TB) == 1 and Rf >= 2 * _SUBLANE:
        TB = _round_up(pl.cdiv(Rf, 2), _SUBLANE)

    grid = (pl.cdiv(Rf, TB),)
    out_flat = pl.pallas_call(
        _flat_kernel,
        out_shape=jax.ShapeDtypeStruct((Rf, _LANE), out_dtype),
        grid_spec=pltpu.PrefetchScalarGridSpec(
            num_scalar_prefetch=0,
            grid=grid,
            in_specs=[pl.BlockSpec((TB, G), lambda i: (i, 0)),
                      pl.BlockSpec((G, _LANE), lambda i: (0, 0))],   # constant block
            out_specs=pl.BlockSpec((TB, _LANE), lambda i: (i, 0)),
        ),
        compiler_params=pltpu.CompilerParams(
            dimension_semantics=("parallel",)),
    )(age2d, expand)

    # Flat (Rf, 128) has the same row-major element order as (B_pad, T_pad).
    out = out_flat.reshape(B_pad, T_pad)
    if (B_pad, T_pad) != (B, T):
        out = out[:B, :T]                        # only the ragged/padded case pays a copy
    return out


def age_based_guideline(x, preference, batch, *, use_pallas=None,
                        out_dtype=jnp.float32):
    """JAX/Pallas equivalent of AgeBasedGuideline.forward.

    x and preference are unused (as in the PyTorch module). batch holds 'y' (B, T) — used
    only for its shape — and 'age' (B,).  out_dtype=jnp.bfloat16 is lossless here
    (values are exactly 2.0/4.0) and halves HBM write traffic; default stays f32 to match
    the reference module's dtype.
    """
    del x, preference  # unused by the reference forward pass
    y = batch["y"]
    age = jnp.asarray(batch["age"], dtype=jnp.float32).reshape(-1)
    B, T = y.shape
    total = B * T

    if use_pallas is None:
        use_pallas = total >= _MIN_ELEMENTS_FOR_PALLAS
    if not use_pallas:
        # Tiny inputs: let XLA fuse the broadcast-select into the consumer (zero HBM writes).
        older = age.reshape(B, 1) >= AGE_THRESHOLD
        val = jnp.where(older, BIANNUAL_GUIDELINE_IN_6MO_INTERVALS,
                        ANNUAL_GUIDELINE_IN_6MO_INTERVALS)
        return jnp.broadcast_to(val, (B, T)).astype(out_dtype)

    if T % _LANE == 0:
        return _pallas_bcast(age, B, T, out_dtype)
    if T < _LANE:
        return _pallas_flat(age, B, T, out_dtype)
    # T > 128 and not a multiple of 128: full-width blocks, >= 50% lane-dense stores.
    return _pallas_bcast(age, B, T, out_dtype)


# ----------------------------------------------------------------------------
# Demo / self-check
# ----------------------------------------------------------------------------
if __name__ == "__main__":
    key = jax.random.PRNGKey(0)
    k_y, k_age, k_x, k_pref, k_age2, k_age3 = jax.random.split(key, 6)

    def ref(age, shape):
        older = (age >= AGE_THRESHOLD)[:, None]
        return jnp.broadcast_to(jnp.where(older, 4.0, 2.0), shape)

    # Case 1: small screening horizon (T=8), B multiple of 128//T -> exact flat-slab path.
    B, T = 64, 8
    y = jax.random.uniform(k_y, (B, T), dtype=jnp.float32)
    age = jax.random.uniform(k_age, (B,), minval=40.0, maxval=70.0, dtype=jnp.float32)
    x = jax.random.normal(k_x, (B, 16), dtype=jnp.float32)             # unused
    preference = jax.random.normal(k_pref, (B, 4), dtype=jnp.float32)  # unused
    rec = jax.block_until_ready(
        age_based_guideline(x, preference, {"y": y, "age": age}, use_pallas=True))
    assert rec.shape == (B, T) and rec.dtype == jnp.float32
    assert jnp.array_equal(rec, ref(age, (B, T))), "flat-path mismatch vs reference"

    # Case 2: lane-multiple horizon (T=128) -> broadcast kernel path (2-step grid).
    B2, T2 = 64, 128
    y2 = jnp.zeros((B2, T2), jnp.float32)
    age2 = jax.random.uniform(k_age2, (B2,), minval=40.0, maxval=70.0, dtype=jnp.float32)
    rec2 = jax.block_until_ready(
        age_based_guideline(None, None, {"y": y2, "age": age2}, use_pallas=True))
    assert jnp.array_equal(rec2, ref(age2, (B2, T2))), "bcast-path mismatch vs reference"

    # Case 3: awkward small T (10 does not divide 128) and ragged B -> padded flat-slab path.
    B3, T3 = 50, 10
    y3 = jnp.zeros((B3, T3), jnp.float32)
    age3 = jax.random.uniform(k_age3, (B3,), minval=40.0, maxval=70.0, dtype=jnp.float32)
    rec3 = jax.block_until_ready(
        age_based_guideline(None, None, {"y": y3, "age": age3}, use_pallas=True))
    assert rec3.shape == (B3, T3)
    assert jnp.array_equal(rec3, ref(age3, (B3, T3))), "padded-flat-path mismatch"

    # Case 4: bf16 output option (lossless for 2.0/4.0) on the flat path.
    rec4 = jax.block_until_ready(
        age_based_guideline(None, None, {"y": y, "age": age},
                            use_pallas=True, out_dtype=jnp.bfloat16))
    assert rec4.dtype == jnp.bfloat16
    assert jnp.array_equal(rec4.astype(jnp.float32), ref(age, (B, T))), "bf16 mismatch"

    print("KERNEL_OK")
</pallas_src>

<mosaic_0001>
module attributes {stable_mosaic.version = 11 : i64} {
  func.func @_flat_kernel(%arg0: i32, %arg1: memref<4x16xf32, #tpu.memory_space<vmem>>, %arg2: memref<16x128xbf16, #tpu.memory_space<vmem>>, %arg3: memref<4x128xf32, #tpu.memory_space<vmem>>) attributes {dimension_semantics = [#tpu.dimension_semantics<parallel>], iteration_bounds = array<i64: 1>, scalar_prefetch = 0 : i64, scratch_operands = 0 : i64, tpu.core_type = #tpu.core_type<tc>, window_params = [{transform_indices = @transform_0, window_bounds = array<i64: 4, 16>}, {pipeline_mode = #tpu.pipeline_mode<synchronous>, transform_indices = @transform_1, window_bounds = array<i64: 16, 128>}, {transform_indices = @transform_2, window_bounds = array<i64: 4, 128>}]} {
    %c0 = arith.constant 0 : index
    %c0_0 = arith.constant 0 : index
    %0 = vector.load %arg1[%c0, %c0_0] : memref<4x16xf32, #tpu.memory_space<vmem>>, vector<4x16xf32>
    %cst = arith.constant 5.500000e+01 : f32
    %1 = vector.broadcast %cst : f32 to vector<4x16xf32>
    %2 = arith.cmpf oge, %0, %1 : vector<4x16xf32>
    %cst_1 = arith.constant 4.000000e+00 : f32
    %cst_2 = arith.constant 2.000000e+00 : f32
    %3 = vector.broadcast %cst_1 : f32 to vector<4x16xf32>
    %4 = vector.broadcast %cst_2 : f32 to vector<4x16xf32>
    %5 = arith.select %2, %3, %4 : vector<4x16xi1>, vector<4x16xf32>
    %6 = arith.truncf %5 : vector<4x16xf32> to vector<4x16xbf16>
    %c0_3 = arith.constant 0 : index
    %c0_4 = arith.constant 0 : index
    %7 = vector.load %arg2[%c0_3, %c0_4] : memref<16x128xbf16, #tpu.memory_space<vmem>>, vector<16x128xbf16>
    %cst_5 = arith.constant dense<0.000000e+00> : vector<4x128xf32>
    %8 = tpu.matmul %6, %7, %cst_5 {dimension_numbers = #tpu.dot_dimension_numbers<[1], [0], [0], [1], [0, 0, 1, 1], [], []>} : vector<4x16xbf16>, vector<16x128xbf16>, vector<4x128xf32> -> vector<4x128xf32>
    %c0_6 = arith.constant 0 : index
    %c0_7 = arith.constant 0 : index
    %9 = vector.load %arg3[%c0_6, %c0_7] : memref<4x128xf32, #tpu.memory_space<vmem>>, vector<4x128xf32>
    tpu.vector_store %arg3[%c0_6, %c0_7], %8 {strides = array<i32>} : memref<4x128xf32, #tpu.memory_space<vmem>>, vector<4x128xf32>,
    return
  }
  func.func @transform_0(%arg0: i32) -> (i32, i32) {
    %c0_i32 = arith.constant 0 : i32
    %c0_i32_0 = arith.constant 0 : i32
    return %arg0, %c0_i32 : i32, i32
  }
  func.func @transform_1(%arg0: i32) -> (i32, i32) {
    %c0_i32 = arith.constant 0 : i32
    %c0_i32_0 = arith.constant 0 : i32
    %c0_i32_1 = arith.constant 0 : i32
    return %c0_i32, %c0_i32_0 : i32, i32
  }
  func.func @transform_2(%arg0: i32) -> (i32, i32) {
    %c0_i32 = arith.constant 0 : i32
    %c0_i32_0 = arith.constant 0 : i32
    return %arg0, %c0_i32 : i32, i32
  }
}

</mosaic_0001>

<llo_original>
// kernel: tpu_custom_call.1
$region0: #{tpu_custom_call.1}
  #allocation0 [shape = 'u32[]', space=smem, size = 0x4, offset = 0x4, fixed_abs, tag = 'smem constant byte address 0x4 - core index']
  #allocation1 [shape = 'u32[72,128]{1,0:T(1,128)}', space=vmem, size = 0x9000, scoped, tag = 'internal scratch']
  %s0 = inlined_call_operand.hbm [shape: f32[4,16], index: 0, kind: input, shape index: {}]
  %s1 = inlined_call_operand.hbm [shape: bf16[16,128], index: 1, kind: input, shape index: {}]
  %s2 = inlined_call_operand.hbm [shape: f32[4,128], index: 2, kind: output, shape index: {}]
  %s3 = sld [smem:[#allocation0]]
  $region26: #{tpu_custom_call.1} parent=0
    _
  %s5 = ssub.s32 1, %s3
  %s6 = scalar_select 0, %s5, %s3
  $region1: #{tpu_custom_call.1} parent=0
    #allocation2 [shape = 'u8[2048]{0}', space=vmem, size = 0x800, scoped, tag = 'input window, operand 0, single buffered']
    #allocation3 [shape = 's32[1]{0}', space=sflag, size = 0x4, scoped, tag = 'scoped memory for tpu_custom_call.1']
    #allocation4 [shape = 's32[1]{0}', space=sflag, size = 0x4, scoped, tag = 'scoped memory for tpu_custom_call.1']
    #allocation5 [shape = 'u8[4096]{0}', space=vmem, size = 0x1000, scoped, tag = 'input window, operand 1, single buffered']
    #allocation6 [shape = 's32[1]{0}', space=sflag, size = 0x4, scoped, tag = 'scoped memory for tpu_custom_call.1']
    #allocation7 [shape = 'u8[2048]{0}', space=vmem, size = 0x800, scoped, tag = 'output window, operand 0, single buffered']
    %7 = vsyncpa [#allocation3], 0
    %8 = vsyncpa [#allocation6], 0
    %9 = vsyncpa [#allocation4], 0
    // Predicated region
    $region2: #{tpu_custom_call.1} parent=1 // pred_check
      _
    $region3: #{tpu_custom_call.1} parent=1 // pred_check_branch
      %11 = sbr.rel (0) target = $region5
    $region4: #{tpu_custom_call.1} parent=1 // pred_region
      %13 = vsyncadd [#allocation3], 0
      %s15 = sshll.u32 %s0, 4
      %s16 = int_to_ptr.hbm [resolvable:$true] %s15
      %s17 = sshll.u32 [#allocation2], 4
      %s18 = int_to_ptr.vmem [resolvable:$true] %s17
      %20 = dma.hbm_to_vmem [thread:$0]  %s16, 64, %s18, [#allocation3]
    $region5: #{tpu_custom_call.1} parent=1 // pred_fallthru
      _
    // Predicated region
    $region6: #{tpu_custom_call.1} parent=1 // pred_check
      _
    $region7: #{tpu_custom_call.1} parent=1 // pred_check_branch
      %22 = sbr.rel (0) target = $region9
    $region8: #{tpu_custom_call.1} parent=1 // pred_region
      %24 = vsyncadd [#allocation6], 0
      %s25 = sshll.u32 %s1, 4
      %s26 = int_to_ptr.hbm [resolvable:$true] %s25
      %s27 = sshll.u32 [#allocation5], 4
      %s28 = int_to_ptr.vmem [resolvable:$true] %s27
      %33 = dma.hbm_to_vmem [thread:$0]  %s26, 128, %s28, [#allocation6], 64, 64, 4
    $region9: #{tpu_custom_call.1} parent=1 // pred_fallthru
      _
    // Predicated region
    $region10: #{tpu_custom_call.1} parent=1 // pred_check
      _
    $region11: #{tpu_custom_call.1} parent=1 // pred_check_branch
      %35 = sbr.rel (0) target = $region13
    $region12: #{tpu_custom_call.1} parent=1 // pred_region
      %37 = dma.done [#allocation3], 64
    $region13: #{tpu_custom_call.1} parent=1 // pred_fallthru
      _
    // Predicated region
    $region14: #{tpu_custom_call.1} parent=1 // pred_check
      _
    $region15: #{tpu_custom_call.1} parent=1 // pred_check_branch
      %39 = sbr.rel (0) target = $region17
    $region16: #{tpu_custom_call.1} parent=1 // pred_region
      %41 = dma.done [#allocation6], 128
    $region17: #{tpu_custom_call.1} parent=1 // pred_fallthru
      _
    %v43 = vld [vmem:[#allocation2] sm:$0xf]
    %vm44 = vcmp.ge.f32.partialorder %v43, 55.0
    %v45 = vsel %vm44, 4.0, 2.0
    %v46 = vpack.c.bf16 %v45, %v45
    %v47 = vld [vmem:[#allocation5] sm:$0xf]
    %v48 = vld [vmem:[#allocation5 + $0x4] sm:$0xf]
    %v51 = vunpack.c.l.b16 %v47
    %v52 = vunpack.c.l.b16 %v48
    %v53 = vpack.c.b16 %v52, %v51
    %vm55 = vcmask 130048
    %v57 = vsel %vm55, %v46, 0
    %59 = vmatpush.bf16.msra.mxu0 0
    %60 = vmatpush.bf16.msra.mxu0 0
    %61 = vmatpush.bf16.msra.mxu0 0
    %62 = vmatpush.bf16.msra.mxu0 0
    %63 = vmatpush.bf16.msra.mxu0 0
    %64 = vmatpush.bf16.msra.mxu0 0
    %65 = vmatpush.bf16.msra.mxu0 0
    %66 = vmatpush.bf16.msra.mxu0 %v53
    %67 = vmatmul.bf16.gmra.mxu0 %v57
    %v68 = vpop.f32.mrf.mxu0
    %v69 = vadd.f32 0.0, %v68
    %v70 = vpop.f32.mrf.mxu0
    %71 = vdwg.mxu0
    %72 = vst [vmem:[#allocation7] sm:$0xf] %v69
    // Predicated region
    $region18: #{tpu_custom_call.1} parent=1 // pred_check
      _
    $region19: #{tpu_custom_call.1} parent=1 // pred_check_branch
      %74 = sbr.rel (0) target = $region21
    $region20: #{tpu_custom_call.1} parent=1 // pred_region
      %76 = vsyncadd [#allocation4], 0
      %s78 = sshll.u32 [#allocation7], 4
      %s79 = int_to_ptr.vmem [resolvable:$true] %s78
      %s80 = sshll.u32 %s2, 4
      %s81 = int_to_ptr.hbm [resolvable:$true] %s80
      %83 = dma.vmem_to_hbm [thread:$0]  %s79, 64, %s81, [#allocation4]
    $region21: #{tpu_custom_call.1} parent=1 // pred_fallthru
      _
    // Predicated region
    $region22: #{tpu_custom_call.1} parent=1 // pred_check
      _
    $region23: #{tpu_custom_call.1} parent=1 // pred_check_branch
      %85 = sbr.rel (0) target = $region25
    $region24: #{tpu_custom_call.1} parent=1 // pred_region
      %87 = dma.done [#allocation4], 64
    $region25: #{tpu_custom_call.1} parent=1 // pred_fallthru
      _
    %88 = vsyncpa [#allocation3], 1
    %89 = vsyncpa [#allocation6], 1
    %90 = vsyncpa [#allocation4], 1

</llo_original>
